<compile_context>
chip_gen: v7x
topology: tpu7x:2x2x1
jax: 0.10.0
libtpu: 0.0.40
codegen_flags: <defaults>
</compile_context>

<pallas_src>
import math

import jax
import jax.numpy as jnp
from jax.experimental import pallas as pl
from jax.experimental.pallas import tpu as pltpu

_SQRT_2_OVER_PI = math.sqrt(2.0 / math.pi)
_LANE_CANDIDATES = (8192, 4096, 2048, 1024, 512, 256, 128)


def _cdiv(a, b):
    return -(-a // b)


def _round_up(a, m):
    return _cdiv(a, m) * m


def _gelu_kernel(x_ref, o_ref):
    # Compute in f32; the polynomial sits in VALU slack under the DMA and the
    # tanh goes to the EUP slot.
    x = x_ref[...].astype(jnp.float32)
    c0 = jnp.float32(_SQRT_2_OVER_PI)
    c1 = jnp.float32(_SQRT_2_OVER_PI * 0.044715)
    half = jnp.float32(0.5)
    t = x * x
    inner = x * (c0 + c1 * t)           # == sqrt(2/pi) * (x + 0.044715*x^3)
    y = x * (half + half * jnp.tanh(inner))
    o_ref[...] = y.astype(o_ref.dtype)


def _tensorcores_per_chip():
    # v7x has 2 TensorCores per chip; v5e/v6e have 1.  Best-effort detection,
    # defaulting to 1 (safe: just no forced grid split).
    try:
        dev = jax.devices()[0]
        n = getattr(dev, "num_cores", None)
        if isinstance(n, int) and n >= 1:
            return n
        kind = str(getattr(dev, "device_kind", "")).lower()
        return 2 if "v7" in kind else 1
    except Exception:
        return 1


def _run_gelu_2d(x2d, block_rows):
    rows, lanes = x2d.shape
    itemsize = jnp.dtype(x2d.dtype).itemsize
    grid = (pl.cdiv(rows, block_rows),)
    return pl.pallas_call(
        _gelu_kernel,
        out_shape=jax.ShapeDtypeStruct((rows, lanes), x2d.dtype),
        grid_spec=pltpu.PrefetchScalarGridSpec(
            num_scalar_prefetch=0,
            grid=grid,
            in_specs=[pl.BlockSpec((block_rows, lanes), lambda i: (i, 0))],
            out_specs=pl.BlockSpec((block_rows, lanes), lambda i: (i, 0)),
        ),
        compiler_params=pltpu.CompilerParams(
            dimension_semantics=("parallel",),
        ),
        cost_estimate=pl.CostEstimate(
            flops=8 * rows * lanes,
            transcendentals=rows * lanes,
            bytes_accessed=2 * rows * lanes * itemsize,
        ),
    )(x2d)


def _run_gelu_tail(x_flat):
    # Small remainder: pad to a multiple of 128 lanes and run one
    # full-extent (tail_rows, 128) block.  GELU(0) == 0, padding is harmless.
    rem = x_flat.shape[0]
    padded = _round_up(rem, 128)
    x2d = jnp.pad(x_flat, (0, padded - rem)).reshape(-1, 128)
    y2d = _run_gelu_2d(x2d, x2d.shape[0])
    return y2d.reshape(-1)[:rem]


def gelu_pallas(x, *, target_block_bytes=2 * 1024 * 1024):
    orig_shape = x.shape
    n = x.size
    if n == 0:
        return x
    itemsize = jnp.dtype(x.dtype).itemsize
    # sublane packing: 8 rows/vreg for 4-byte, 16 for 2-byte, 32 for 1-byte
    sub_mult = max(8, 32 // itemsize)

    x_flat = x.reshape(-1)

    # Pick the lane width: prefer a large multiple of 128 that divides the
    # element count; otherwise take the largest candidate that fits and
    # handle the remainder with the tail path.  Never emit lanes < 128.
    lanes = None
    for cand in _LANE_CANDIDATES:
        if n % cand == 0:
            lanes = cand
            break
    if lanes is None:
        for cand in _LANE_CANDIDATES:
            if n >= cand:
                lanes = cand
                break
    if lanes is None:
        # Tiny input (< 128 elements): tail path only.
        return _run_gelu_tail(x_flat).reshape(orig_shape)

    rows = n // lanes
    bulk = rows * lanes
    rem = n - bulk

    # ---- block sizing (multiple of sub_mult, or full row extent) ----
    n_cores = _tensorcores_per_chip()
    bytes_per_row = lanes * itemsize
    max_block_rows = max(
        sub_mult, (target_block_bytes // bytes_per_row) // sub_mult * sub_mult
    )
    if rows <= max_block_rows:
        if n_cores > 1 and rows >= 2 * sub_mult:
            # Split evenly across TensorCores on v7x.
            block_rows = _round_up(_cdiv(rows, n_cores), sub_mult)
        else:
            # Single-TC chip (or tiny input): one full-extent block, no
            # pointless serial grid steps.
            block_rows = rows
    else:
        block_rows = max_block_rows
        if n_cores > 1 and _cdiv(rows, block_rows) % n_cores != 0:
            # Nudge block_rows down so the step count splits evenly.
            br = block_rows - sub_mult
            while br >= sub_mult:
                if _cdiv(rows, br) % n_cores == 0:
                    block_rows = br
                    break
                br -= sub_mult

    x2d = x_flat[:bulk].reshape(rows, lanes)
    y_bulk = _run_gelu_2d(x2d, block_rows).reshape(-1)

    if rem == 0:
        return y_bulk.reshape(orig_shape)
    y_tail = _run_gelu_tail(x_flat[bulk:])
    return jnp.concatenate([y_bulk, y_tail]).reshape(orig_shape)


def gelu_ref(x):
    xf = x.astype(jnp.float32)
    y = 0.5 * xf * (1.0 + jnp.tanh(jnp.sqrt(2.0 / jnp.pi)
                                   * (xf + 0.044715 * xf ** 3)))
    return y.astype(x.dtype)


if __name__ == "__main__":
    key = jax.random.PRNGKey(0)

    # Small GPT-ish activation shape: (batch=2, seq=8, hidden=32).
    x = jax.random.normal(key, (2, 8, 32), dtype=jnp.float32)
    y = gelu_pallas(x)
    jax.block_until_ready(y)
    assert y.shape == x.shape and y.dtype == x.dtype
    assert jnp.allclose(y, gelu_ref(x), atol=1e-5, rtol=1e-5)

    # Larger, tiled, lane-dense case (multiple grid steps).
    x_big = jax.random.normal(key, (4, 256, 1024), dtype=jnp.float32)
    y_big = gelu_pallas(x_big)
    jax.block_until_ready(y_big)
    assert jnp.allclose(y_big, gelu_ref(x_big), atol=1e-5, rtol=1e-5)

    # Element count not divisible by 128: bulk slab + padded 128-lane tail.
    x_odd = jax.random.normal(key, (3, 7, 33), dtype=jnp.float32)
    y_odd = gelu_pallas(x_odd)
    jax.block_until_ready(y_odd)
    assert y_odd.shape == x_odd.shape
    assert jnp.allclose(y_odd, gelu_ref(x_odd), atol=1e-5, rtol=1e-5)

    # bf16 input exercises the 16-sublane-aware block rounding.
    x_bf16 = jax.random.normal(key, (2, 128, 768), dtype=jnp.bfloat16)
    y_bf16 = gelu_pallas(x_bf16)
    jax.block_until_ready(y_bf16)
    assert y_bf16.dtype == jnp.bfloat16
    assert jnp.allclose(y_bf16.astype(jnp.float32),
                        gelu_ref(x_bf16).astype(jnp.float32),
                        atol=3e-2, rtol=3e-2)

    print("KERNEL_OK")
</pallas_src>

<mosaic_0001>
module attributes {stable_mosaic.version = 11 : i64} {
  func.func @_gelu_kernel(%arg0: i32, %arg1: memref<1x512xf32, #tpu.memory_space<vmem>>, %arg2: memref<1x512xf32, #tpu.memory_space<vmem>>) attributes {dimension_semantics = [#tpu.dimension_semantics<parallel>], iteration_bounds = array<i64: 1>, scalar_prefetch = 0 : i64, scratch_operands = 0 : i64, tpu.core_type = #tpu.core_type<tc>, window_params = [{transform_indices = @transform_0, window_bounds = array<i64: 1, 512>}, {transform_indices = @transform_1, window_bounds = array<i64: 1, 512>}]} {
    %c0 = arith.constant 0 : index
    %c0_0 = arith.constant 0 : index
    %0 = vector.load %arg1[%c0, %c0_0] : memref<1x512xf32, #tpu.memory_space<vmem>>, vector<1x512xf32>
    %1 = arith.mulf %0, %0 : vector<1x512xf32>
    %cst = arith.constant 0.0356774069 : f32
    %2 = vector.broadcast %cst : f32 to vector<1x512xf32>
    %3 = arith.mulf %2, %1 : vector<1x512xf32>
    %cst_1 = arith.constant 0.797884583 : f32
    %4 = vector.broadcast %cst_1 : f32 to vector<1x512xf32>
    %5 = arith.addf %4, %3 : vector<1x512xf32>
    %6 = arith.mulf %0, %5 : vector<1x512xf32>
    %7 = math.tanh %6 : vector<1x512xf32>
    %cst_2 = arith.constant 5.000000e-01 : f32
    %8 = vector.broadcast %cst_2 : f32 to vector<1x512xf32>
    %9 = arith.mulf %8, %7 : vector<1x512xf32>
    %cst_3 = arith.constant 5.000000e-01 : f32
    %10 = vector.broadcast %cst_3 : f32 to vector<1x512xf32>
    %11 = arith.addf %10, %9 : vector<1x512xf32>
    %12 = arith.mulf %0, %11 : vector<1x512xf32>
    %c0_4 = arith.constant 0 : index
    %c0_5 = arith.constant 0 : index
    %13 = vector.load %arg2[%c0_4, %c0_5] : memref<1x512xf32, #tpu.memory_space<vmem>>, vector<1x512xf32>
    tpu.vector_store %arg2[%c0_4, %c0_5], %12 {strides = array<i32>} : memref<1x512xf32, #tpu.memory_space<vmem>>, vector<1x512xf32>,
    return
  }
  func.func @transform_0(%arg0: i32) -> (i32, i32) {
    %c0_i32 = arith.constant 0 : i32
    %c0_i32_0 = arith.constant 0 : i32
    return %arg0, %c0_i32 : i32, i32
  }
  func.func @transform_1(%arg0: i32) -> (i32, i32) {
    %c0_i32 = arith.constant 0 : i32
    %c0_i32_0 = arith.constant 0 : i32
    return %arg0, %c0_i32 : i32, i32
  }
}

</mosaic_0001>

<llo_original>
// kernel: tpu_custom_call.1
$region0: #{tpu_custom_call.1}
  #allocation0 [shape = 'u32[]', space=smem, size = 0x4, offset = 0x4, fixed_abs, tag = 'smem constant byte address 0x4 - core index']
  #allocation1 [shape = 'u32[144,128]{1,0:T(1,128)}', space=vmem, size = 0x12000, scoped, tag = 'internal scratch']
  %s0 = inlined_call_operand.hbm [shape: f32[1,512], index: 0, kind: input, shape index: {}]
  %s1 = inlined_call_operand.hbm [shape: f32[1,512], index: 1, kind: output, shape index: {}]
  %s2 = sld [smem:[#allocation0]]
  $region18: #{tpu_custom_call.1} parent=0
    _
  %s4 = ssub.s32 1, %s2
  %s5 = scalar_select 0, %s4, %s2
  $region1: #{tpu_custom_call.1} parent=0
    #allocation2 [shape = 'u8[2048]{0}', space=vmem, size = 0x800, scoped, tag = 'input window, operand 0, single buffered']
    #allocation3 [shape = 's32[1]{0}', space=sflag, size = 0x4, scoped, tag = 'scoped memory for tpu_custom_call.1']
    #allocation4 [shape = 's32[1]{0}', space=sflag, size = 0x4, scoped, tag = 'scoped memory for tpu_custom_call.1']
    #allocation5 [shape = 'u8[2048]{0}', space=vmem, size = 0x800, scoped, tag = 'output window, operand 0, single buffered']
    %6 = vsyncpa [#allocation3], 0
    %7 = vsyncpa [#allocation4], 0
    // Predicated region
    $region2: #{tpu_custom_call.1} parent=1 // pred_check
      _
    $region3: #{tpu_custom_call.1} parent=1 // pred_check_branch
      %9 = sbr.rel (0) target = $region5
    $region4: #{tpu_custom_call.1} parent=1 // pred_region
      %s11 = ssub.s32 64, 64
      %12 = vsyncadd [#allocation3], %s11
      %s14 = sshll.u32 [#allocation2], 4
      %s15 = int_to_ptr.vmem [resolvable:$true] %s14
      %17 = dma.hbm_to_vmem [thread:$0]  %s0, 64, %s15, [#allocation3]
    $region5: #{tpu_custom_call.1} parent=1 // pred_fallthru
      _
    // Predicated region
    $region6: #{tpu_custom_call.1} parent=1 // pred_check
      _
    $region7: #{tpu_custom_call.1} parent=1 // pred_check_branch
      %19 = sbr.rel (0) target = $region9
    $region8: #{tpu_custom_call.1} parent=1 // pred_region
      %20 = dma.done [#allocation3], 64
    $region9: #{tpu_custom_call.1} parent=1 // pred_fallthru
      _
    %v21 = vld [vmem:[#allocation2] sm:$0xf]
    %v22 = vmul.f32 %v21, %v21
    %v23 = vmul.f32 %v22, 0.035677407
    %v24 = vadd.f32 %v23, 0.7978846
    %v25 = vmul.f32 %v21, %v24
    %v26 = vtanh.pop %v25
    %v27 = vmul.f32 %v26, 0.5
    %v28 = vadd.f32 %v27, 0.5
    %v29 = vmul.f32 %v21, %v28
    %v30 = vlaneseq
    %vm31 = vcmp.ge.s32.totalorder %v30, 0
    %vm32 = vcmp.lt.s32.totalorder %v30, 512
    %vm33 = vmand %vm31, %vm32
    %34 = vst.msk [vmem:[#allocation5] sm:$0xf] %vm33, %v29
    // Predicated region
    $region10: #{tpu_custom_call.1} parent=1 // pred_check
      _
    $region11: #{tpu_custom_call.1} parent=1 // pred_check_branch
      %36 = sbr.rel (0) target = $region13
    $region12: #{tpu_custom_call.1} parent=1 // pred_region
      %s38 = ssub.s32 64, 64
      %39 = vsyncadd [#allocation4], %s38
      %s41 = sshll.u32 [#allocation5], 4
      %s42 = int_to_ptr.vmem [resolvable:$true] %s41
      %44 = dma.vmem_to_hbm [thread:$0]  %s42, 64, %s1, [#allocation4]
    $region13: #{tpu_custom_call.1} parent=1 // pred_fallthru
      _
    // Predicated region
    $region14: #{tpu_custom_call.1} parent=1 // pred_check
      _
    $region15: #{tpu_custom_call.1} parent=1 // pred_check_branch
      %46 = sbr.rel (0) target = $region17
    $region16: #{tpu_custom_call.1} parent=1 // pred_region
      %47 = dma.done [#allocation4], 64
    $region17: #{tpu_custom_call.1} parent=1 // pred_fallthru
      _
    %48 = vsyncpa [#allocation3], 1
    %49 = vsyncpa [#allocation4], 1

</llo_original>
